<compile_context>
chip_gen: v7x
topology: tpu7x:2x2x1
jax: 0.10.0
libtpu: 0.0.40
codegen_flags: <defaults>
</compile_context>

<pallas_src>
import functools

import jax
import jax.numpy as jnp
from jax.experimental import pallas as pl
from jax.experimental.pallas import tpu as pltpu


def _sum_logsoftmax_partial_kernel(x_ref, part_ref, *, num_rows, num_cols, tile_rows):
    x = x_ref[...].astype(jnp.float32)                                  # (TB, C)

    # Numerically stable per-row max + log-sum-exp (exp/log go to the EUP slot),
    # plus per-row sum of x. No full-tile masking pass.
    m = jnp.max(x, axis=-1, keepdims=True)                              # (TB, 1)
    lse = jnp.log(jnp.sum(jnp.exp(x - m), axis=-1, keepdims=True))      # (TB, 1)
    row_sum = jnp.sum(x, axis=-1, keepdims=True)                        # (TB, 1)
    mlse = m + lse                                                      # (TB, 1)

    if num_rows % tile_rows != 0:
        # Tail tile only: mask the (TB,1) per-row scalars. Garbage (NaN/Inf) in
        # padded rows stays confined to those rows and is zeroed here.
        i = pl.program_id(0)
        row_ids = jax.lax.broadcasted_iota(jnp.int32, (tile_rows, 1), 0) + i * tile_rows
        row_valid = row_ids < num_rows                                  # (TB, 1)
        row_sum = jnp.where(row_valid, row_sum, 0.0)
        mlse = jnp.where(row_valid, mlse, 0.0)

    # sum_j log_softmax(x)_ij over this tile = sum(row_sum) - C * sum(m + lse)
    part_ref[0, 0] = jnp.sum(row_sum) - jnp.float32(num_cols) * jnp.sum(mlse)


def sum_logsoftmax_loss(x, *, tile_rows=None, target_tile_bytes=4 * 1024 * 1024):
    B, C = x.shape
    itemsize = jnp.dtype(x.dtype).itemsize
    # Native sublane packing: f32 -> 8 rows, bf16/f16 -> 16, int8/fp8 -> 32.
    sublane = max(8, 32 // itemsize)

    if tile_rows is None:
        # ~4 MiB of the *input* dtype per buffer: amortizes the ~0.35 us per-step
        # overhead on v7x's fast HBM while double-buffering comfortably within
        # every generation's scoped VMEM (limit raised below).
        rows = max(sublane, target_tile_bytes // (C * itemsize))
        tile_rows = (rows // sublane) * sublane

    if tile_rows >= B:
        if B > 2 * sublane:
            # Keep >= 2 tiles so the "parallel" grid axis shards across both
            # TensorCores on v7x instead of idling one of them.
            half = pl.cdiv(B, 2)
            tile_rows = ((half + sublane - 1) // sublane) * sublane
            if tile_rows >= B:
                tile_rows = B
        else:
            tile_rows = B  # tiny batch: single full-extent block
    num_tiles = pl.cdiv(B, tile_rows)

    kernel = functools.partial(
        _sum_logsoftmax_partial_kernel,
        num_rows=B, num_cols=C, tile_rows=tile_rows)

    cost = pl.CostEstimate(
        flops=5 * B * C,
        transcendentals=B * C + B,                  # exp per element, log per row
        bytes_accessed=B * C * itemsize + num_tiles * 4)

    partials = pl.pallas_call(
        kernel,
        out_shape=jax.ShapeDtypeStruct((num_tiles, 1), jnp.float32),
        grid=(num_tiles,),
        in_specs=[pl.BlockSpec((tile_rows, C), lambda i: (i, 0))],
        out_specs=pl.BlockSpec((1, 1), lambda i: (i, 0),
                               memory_space=pltpu.MemorySpace.SMEM),
        compiler_params=pltpu.CompilerParams(
            dimension_semantics=("parallel",),       # shards tiles across TCs on v7x
            vmem_limit_bytes=48 * 1024 * 1024),      # 2x input bufs + f32 intermediates
        cost_estimate=cost,
    )(x)

    # Tiny epilogue: pairwise-sum the per-tile partials, one 1/(B*C) scale, negate.
    return -(jnp.sum(partials) * (1.0 / (B * C)))


if __name__ == "__main__":
    key = jax.random.PRNGKey(0)

    # Small classification-logits shape: (batch, classes) -- single-tile path.
    B, C = 8, 128
    x = jax.random.normal(key, (B, C), dtype=jnp.float32)
    loss = sum_logsoftmax_loss(x)
    jax.block_until_ready(loss)
    ref = -jnp.mean(jax.nn.log_softmax(x, axis=1))
    assert jnp.allclose(loss, ref, rtol=1e-5, atol=1e-5), (loss, ref)

    # Multi-tile + tail masking with an explicit tile size.
    B2, C2 = 13, 128
    x2 = jax.random.normal(jax.random.PRNGKey(1), (B2, C2), dtype=jnp.float32)
    loss2 = sum_logsoftmax_loss(x2, tile_rows=8)
    jax.block_until_ready(loss2)
    ref2 = -jnp.mean(jax.nn.log_softmax(x2, axis=1))
    assert jnp.allclose(loss2, ref2, rtol=1e-5, atol=1e-5), (loss2, ref2)

    # Auto-sized path that exercises the >=2-tile (megacore) split + tail masking.
    B3, C3 = 40, 128
    x3 = jax.random.normal(jax.random.PRNGKey(2), (B3, C3), dtype=jnp.float32)
    loss3 = sum_logsoftmax_loss(x3)
    jax.block_until_ready(loss3)
    ref3 = -jnp.mean(jax.nn.log_softmax(x3, axis=1))
    assert jnp.allclose(loss3, ref3, rtol=1e-5, atol=1e-5), (loss3, ref3)

    print("KERNEL_OK")
</pallas_src>

<mosaic_0001>
module attributes {stable_mosaic.version = 11 : i64} {
  func.func @_sum_logsoftmax_partial_kernel(%arg0: i32, %arg1: memref<8x128xf32, #tpu.memory_space<vmem>>, %arg2: memref<1x1xf32, #tpu.memory_space<smem>>) attributes {dimension_semantics = [#tpu.dimension_semantics<parallel>], iteration_bounds = array<i64: 1>, scalar_prefetch = 0 : i64, scratch_operands = 0 : i64, tpu.core_type = #tpu.core_type<tc>, window_params = [{transform_indices = @transform_0, window_bounds = array<i64: 8, 128>}, {transform_indices = @transform_1, window_bounds = array<i64: 1, 1>}]} {
    %c0 = arith.constant 0 : index
    %c0_0 = arith.constant 0 : index
    %0 = vector.load %arg1[%c0, %c0_0] : memref<8x128xf32, #tpu.memory_space<vmem>>, vector<8x128xf32>
    %cst = arith.constant dense<0xFF800000> : vector<8xf32>
    %1 = vector.multi_reduction <maximumf>, %0, %cst [1] : vector<8x128xf32> to vector<8xf32>
    %2 = vector.shape_cast %1 : vector<8xf32> to vector<8x1xf32>
    %3 = vector.broadcast %2 : vector<8x1xf32> to vector<8x128xf32>
    %4 = arith.subf %0, %3 : vector<8x128xf32>
    %5 = math.exp %4 : vector<8x128xf32>
    %cst_1 = arith.constant dense<0.000000e+00> : vector<8xf32>
    %6 = vector.multi_reduction <add>, %5, %cst_1 [1] : vector<8x128xf32> to vector<8xf32>
    %7 = vector.shape_cast %6 : vector<8xf32> to vector<8x1xf32>
    %8 = math.log %7 : vector<8x1xf32>
    %cst_2 = arith.constant dense<0.000000e+00> : vector<8xf32>
    %9 = vector.multi_reduction <add>, %0, %cst_2 [1] : vector<8x128xf32> to vector<8xf32>
    %10 = vector.shape_cast %9 : vector<8xf32> to vector<8x1xf32>
    %11 = arith.addf %2, %8 : vector<8x1xf32>
    %12 = vector.shape_cast %10 : vector<8x1xf32> to vector<1x8x1xf32>
    %cst_3 = arith.constant dense<0.000000e+00> : vector<1xf32>
    %13 = vector.multi_reduction <add>, %12, %cst_3 [1, 2] : vector<1x8x1xf32> to vector<1xf32>
    %14 = vector.shape_cast %13 : vector<1xf32> to vector<1x1x1xf32>
    %15 = vector.extract %14[0, 0, 0] : f32 from vector<1x1x1xf32>
    %16 = vector.shape_cast %11 : vector<8x1xf32> to vector<1x8x1xf32>
    %cst_4 = arith.constant dense<0.000000e+00> : vector<1xf32>
    %17 = vector.multi_reduction <add>, %16, %cst_4 [1, 2] : vector<1x8x1xf32> to vector<1xf32>
    %18 = vector.shape_cast %17 : vector<1xf32> to vector<1x1x1xf32>
    %19 = vector.extract %18[0, 0, 0] : f32 from vector<1x1x1xf32>
    %cst_5 = arith.constant 1.280000e+02 : f32
    %20 = arith.mulf %cst_5, %19 : f32
    %21 = arith.subf %15, %20 : f32
    %c0_6 = arith.constant 0 : index
    %c0_7 = arith.constant 0 : index
    %22 = memref.load %arg2[%c0_6, %c0_7] : memref<1x1xf32, #tpu.memory_space<smem>>
    memref.store %21, %arg2[%c0_6, %c0_7] : memref<1x1xf32, #tpu.memory_space<smem>>
    return
  }
  func.func @transform_0(%arg0: i32) -> (i32, i32) {
    %c0_i32 = arith.constant 0 : i32
    %c0_i32_0 = arith.constant 0 : i32
    return %arg0, %c0_i32 : i32, i32
  }
  func.func @transform_1(%arg0: i32) -> (i32, i32) {
    %c0_i32 = arith.constant 0 : i32
    %c0_i32_0 = arith.constant 0 : i32
    return %arg0, %c0_i32 : i32, i32
  }
}

</mosaic_0001>

<llo_original>
// kernel: tpu_custom_call.1
$region0: #{tpu_custom_call.1}
  #allocation0 [shape = 'u32[]', space=smem, size = 0x4, offset = 0x4, fixed_abs, tag = 'smem constant byte address 0x4 - core index']
  #allocation1 [shape = 'u32[144,128]{1,0:T(1,128)}', space=vmem, size = 0x12000, scoped, tag = 'internal scratch']
  %s0 = inlined_call_operand.hbm [shape: f32[8,128], index: 0, kind: input, shape index: {}]
  %s1 = inlined_call_operand.hbm [shape: f32[1,1], index: 1, kind: output, shape index: {}]
  %s2 = sld [smem:[#allocation0]]
  $region18: #{tpu_custom_call.1} parent=0
    _
  %s4 = ssub.s32 1, %s2
  %s5 = scalar_select 0, %s4, %s2
  $region1: #{tpu_custom_call.1} parent=0
    #allocation2 [shape = 'u8[4096]{0}', space=vmem, size = 0x1000, scoped, tag = 'input window, operand 0, single buffered']
    #allocation3 [shape = 's32[1]{0}', space=sflag, size = 0x4, scoped, tag = 'scoped memory for tpu_custom_call.1']
    #allocation4 [shape = 's32[1]{0}', space=sflag, size = 0x4, scoped, tag = 'scoped memory for tpu_custom_call.1']
    #allocation5 [shape = 'u8[512]{0}', space=smem, size = 0x200, scoped, tag = 'output window, operand 0, single buffered']
    %6 = vsyncpa [#allocation3], 0
    %7 = vsyncpa [#allocation4], 0
    // Predicated region
    $region2: #{tpu_custom_call.1} parent=1 // pred_check
      _
    $region3: #{tpu_custom_call.1} parent=1 // pred_check_branch
      %9 = sbr.rel (0) target = $region5
    $region4: #{tpu_custom_call.1} parent=1 // pred_region
      %s11 = ssub.s32 128, 128
      %12 = vsyncadd [#allocation3], %s11
      %s14 = sshll.u32 [#allocation2], 4
      %s15 = int_to_ptr.vmem [resolvable:$true] %s14
      %17 = dma.hbm_to_vmem [thread:$0]  %s0, 128, %s15, [#allocation3]
    $region5: #{tpu_custom_call.1} parent=1 // pred_fallthru
      _
    // Predicated region
    $region6: #{tpu_custom_call.1} parent=1 // pred_check
      _
    $region7: #{tpu_custom_call.1} parent=1 // pred_check_branch
      %19 = sbr.rel (0) target = $region9
    $region8: #{tpu_custom_call.1} parent=1 // pred_region
      %20 = dma.done [#allocation3], 128
    $region9: #{tpu_custom_call.1} parent=1 // pred_fallthru
      _
    %v21 = vld [vmem:[#allocation2] sm:$0xff]
    %22 = vmax.xlane.f32.xlu0 %v21
    %v23 = vpop.xlane.xlu0 %22
    %v24 = vsub.f32 %v21, %v23
    %v25 = vmul.f32 %v24, 1.442695
    %v26 = vpow.pop %v25
    %27 = vadd.xlane.f32.xlu0 %v26
    %v28 = vpop.xlane.xlu0 %27
    %v29 = vlog2.pop %v28
    %v30 = vmul.f32 %v29, 0.6931472
    %31 = vadd.xlane.f32.xlu0 %v21
    %v32 = vpop.xlane.xlu0 %31
    %v33 = vadd.f32 %v23, %v30
    %vm34 = vcmask 7168
    %v35 = vsel %vm34, %v32, 0.0
    %36 = vadd.xlane.f32.xlu0 %v35
    %v37 = vpop.xlane.xlu0 %36
    %v38 = vrot.slane %v37, 4
    %v39 = vadd.f32 %v37, %v38
    %v40 = vrot.slane %v39, 2
    %v41 = vadd.f32 %v39, %v40
    %v42 = vrot.slane %v41, 1
    %v43 = vadd.f32 %v41, %v42
    %s44 = vtos %v43
    %v45 = vsel %vm34, %v33, 0.0
    %46 = vadd.xlane.f32.xlu0 %v45
    %v47 = vpop.xlane.xlu0 %46
    %v48 = vrot.slane %v47, 4
    %v49 = vadd.f32 %v47, %v48
    %v50 = vrot.slane %v49, 2
    %v51 = vadd.f32 %v49, %v50
    %v52 = vrot.slane %v51, 1
    %v53 = vadd.f32 %v51, %v52
    %s54 = vtos %v53
    %s55 = smul.f32 %s54, 128.0
    %s56 = ssub.f32 %s44, %s55
    %s57 = scalar_lea.smem [#allocation5], 0
    %58 = sst [smem:[%s57]] %s56
    // Predicated region
    $region10: #{tpu_custom_call.1} parent=1 // pred_check
      _
    $region11: #{tpu_custom_call.1} parent=1 // pred_check_branch
      %60 = sbr.rel (0) target = $region13
    $region12: #{tpu_custom_call.1} parent=1 // pred_region
      %s62 = ssub.s32 16, 16
      %63 = vsyncadd [#allocation4], %s62
      %66 = dma.smem_to_hbm [#allocation5], 16, %s1, [#allocation4]
    $region13: #{tpu_custom_call.1} parent=1 // pred_fallthru
      _
    // Predicated region
    $region14: #{tpu_custom_call.1} parent=1 // pred_check
      _
    $region15: #{tpu_custom_call.1} parent=1 // pred_check_branch
      %68 = sbr.rel (0) target = $region17
    $region16: #{tpu_custom_call.1} parent=1 // pred_region
      %69 = dma.done [#allocation4], 16
    $region17: #{tpu_custom_call.1} parent=1 // pred_fallthru
      _
    %70 = sfence
    %71 = vsyncpa [#allocation3], 1
    %72 = vsyncpa [#allocation4], 1

</llo_original>
